<compile_context>
chip_gen: v6e
topology: v6e:2x2x1
jax: 0.10.0
libtpu: 0.0.40
codegen_flags: <defaults>
</compile_context>

<pallas_src>
import functools
import math

import jax
import jax.numpy as jnp
from jax import lax
from jax.experimental import pallas as pl
from jax.experimental.pallas import tpu as pltpu


def _make_kernel(R, E, step, compute_dtype):
    G = 3 * E

    def kernel(din_ref, dout_ref, gib_ref, h_ref, wh_ref, bhh_ref, out_ref):
        # Operands resident across the whole propagation loop.
        W_h = wh_ref[...]                       # (E, 9E)  [M_in | M_out | w_hh^T], bf16
        D_in = din_ref[...]                     # (R, R)   block-diag A_in, bf16
        D_out = dout_ref[...]                   # (R, R)   block-diag A_out, bf16
        gi_bias = gib_ref[...]                  # (R, 3E)  fp32 folded gi biases
        # Hoist the bias broadcast out of the (possibly unrolled) step loop.
        b_hh = jnp.broadcast_to(bhh_ref[...], (R, G))     # (R, 3E) fp32

        h0 = h_ref[...].astype(jnp.float32)     # fp32 hidden carry

        def one_step(h):
            # Fused hidden-side GEMM: [h@M_in | h@M_out | h@w_hh^T] in one pass.
            slab = jnp.dot(h.astype(compute_dtype), W_h,
                           preferred_element_type=jnp.float32)    # (R, 9E) fp32
            s_in = slab[:, :G].astype(compute_dtype)
            s_out = slab[:, G:2 * G].astype(compute_dtype)
            gh = slab[:, 2 * G:] + b_hh                            # (R, 3E) fp32

            # Graph contraction as block-diagonal matmuls (full-depth MXU
            # passes instead of TB tiny K=L batched matmuls).
            gi = (jnp.dot(D_in, s_in, preferred_element_type=jnp.float32)
                  + jnp.dot(D_out, s_out, preferred_element_type=jnp.float32)
                  + gi_bias)                                       # (R, 3E) fp32

            # GRU gates (fp32).  NOTE(v6e): gate slices sit at E=32-lane
            # offsets; padding each gate to 128 lanes would cost ~4x MXU N for
            # little gain at this size, so the small relayouts go to the XLU.
            ri = jax.nn.sigmoid(gi[:, :2 * E] + gh[:, :2 * E])     # (R, 2E)
            reset_gate = ri[:, :E]
            input_gate = ri[:, E:]
            new_gate = jnp.tanh(gi[:, 2 * E:] + reset_gate * gh[:, 2 * E:])
            return (1.0 - input_gate) * h + input_gate * new_gate

        if step <= 4:
            h = h0
            for _ in range(step):               # short static unroll
                h = one_step(h)
        else:
            # Bound live ranges for long propagation (vreg pressure).
            h = lax.fori_loop(0, step, lambda _, hh: one_step(hh), h0, unroll=2)

        out_ref[...] = h.astype(out_ref.dtype)

    return kernel


@functools.partial(jax.jit, static_argnames=("step", "block_b"))
def gnn_forward(A, hidden, params, step=1, block_b=None):
    """Pallas TPU implementation of GNN.forward (A: [B,L,2L], hidden: [B,L,E])."""
    compute_dtype = jnp.bfloat16
    f32 = jnp.float32
    B, L, E = hidden.shape
    assert A.shape == (B, L, 2 * L)
    G = 3 * E

    # ---- batch blocking ----------------------------------------------------
    if block_b is None:
        block_b = max(1, 256 // L)              # target ~256 MXU rows per grid step
        if B > 1:
            block_b = min(block_b, -(-B // 2))  # keep >=2 blocks (v7x dual-TC)
    block_b = max(1, min(block_b, B))
    sub = 8 // math.gcd(L, 8)                   # keep R = block_b*L sublane aligned
    block_b = -(-block_b // sub) * sub
    n_blocks = -(-B // block_b)
    Bp = n_blocks * block_b
    R = block_b * L

    if Bp != B:
        pad = Bp - B
        A = jnp.pad(A, ((0, pad), (0, 0), (0, 0)))
        hidden = jnp.pad(hidden, ((0, pad), (0, 0), (0, 0)))
    A = A.astype(f32)
    hidden = hidden.astype(f32)

    # ---- weight prep (fp32 algebra, cast to bf16 only for the MXU) ---------
    Wgi_in = params["w_ih"][:, :E].T.astype(f32)          # (E, 3E)
    Wgi_out = params["w_ih"][:, E:].T.astype(f32)         # (E, 3E)
    M_in = params["w_edge_in"].T.astype(f32) @ Wgi_in     # (E, 3E)
    M_out = params["w_edge_out"].T.astype(f32) @ Wgi_out  # (E, 3E)
    W_h = jnp.concatenate([M_in, M_out, params["w_hh"].T.astype(f32)],
                          axis=1).astype(compute_dtype)   # (E, 9E)
    c_in = params["b_edge_in"].astype(f32) @ Wgi_in       # (1, 3E)
    c_out = params["b_edge_out"].astype(f32) @ Wgi_out    # (1, 3E)
    b_gi0 = (params["b_ih"].astype(f32)
             + params["b_iah"].astype(f32) @ Wgi_in
             + params["b_ioh"].astype(f32) @ Wgi_out)     # (1, 3E)
    b_hh = params["b_hh"].astype(f32)                     # (1, 3E)

    # ---- data prep ----------------------------------------------------------
    A_in = A[:, :, :L]
    A_out = A[:, :, L:]
    # Per-row gi bias, constant across propagation steps: the folded edge
    # biases travel through the graph contraction exactly via A's row sums.
    gi_bias = (A_in.sum(-1, keepdims=True) * c_in[0]
               + A_out.sum(-1, keepdims=True) * c_out[0]
               + b_gi0[0]).reshape(Bp * L, G)             # (Bp*L, 3E) fp32

    # Block-diagonal adjacency per grid block: D[nb] = blockdiag(A[nb*TB + b]).
    eye = jnp.eye(block_b, dtype=f32)

    def block_diag(Ax):                                    # Ax: (Bp, L, L)
        Ax = Ax.reshape(n_blocks, block_b, L, L)
        D = Ax[:, :, :, None, :] * eye[None, :, None, :, None]
        return D.reshape(n_blocks * R, R).astype(compute_dtype)

    D_in = block_diag(A_in)                                # (Bp*L, R) bf16
    D_out = block_diag(A_out)                              # (Bp*L, R) bf16
    hidden2d = hidden.reshape(Bp * L, E)                   # (Bp*L, E) fp32

    kernel = _make_kernel(R, E, step, compute_dtype)
    out2d = pl.pallas_call(
        kernel,
        out_shape=jax.ShapeDtypeStruct((Bp * L, E), jnp.float32),
        grid_spec=pltpu.PrefetchScalarGridSpec(
            num_scalar_prefetch=0,
            grid=(n_blocks,),
            in_specs=[
                pl.BlockSpec((R, R), lambda b: (b, 0)),        # D_in (block-diag)
                pl.BlockSpec((R, R), lambda b: (b, 0)),        # D_out (block-diag)
                pl.BlockSpec((R, G), lambda b: (b, 0)),        # folded gi bias
                pl.BlockSpec((R, E), lambda b: (b, 0)),        # hidden
                pl.BlockSpec((E, 3 * G), lambda b: (0, 0)),    # fused W_h
                pl.BlockSpec((1, G), lambda b: (0, 0)),        # b_hh
            ],
            out_specs=pl.BlockSpec((R, E), lambda b: (b, 0)),
        ),
        compiler_params=pltpu.CompilerParams(
            dimension_semantics=("parallel",)),
    )(D_in, D_out, gi_bias, hidden2d, W_h, b_hh)

    out = out2d.reshape(Bp, L, E)
    return out[:B] if Bp != B else out


def init_params(key, embedding_size):
    """Deterministic synthetic parameters (shapes match the PyTorch module)."""
    E = embedding_size
    keys = jax.random.split(key, 12)
    stdv = 1.0 / jnp.sqrt(E)
    u = lambda k, shape: jax.random.uniform(k, shape, jnp.float32, -stdv, stdv)
    return {
        "w_ih": u(keys[0], (3 * E, 2 * E)),
        "w_hh": u(keys[1], (3 * E, E)),
        "b_ih": u(keys[2], (1, 3 * E)),
        "b_hh": u(keys[3], (1, 3 * E)),
        "b_iah": u(keys[4], (1, E)),
        "b_ioh": u(keys[5], (1, E)),
        "w_edge_in": u(keys[6], (E, E)),
        "b_edge_in": u(keys[7], (1, E)),
        "w_edge_out": u(keys[8], (E, E)),
        "b_edge_out": u(keys[9], (1, E)),
    }


def gnn_cell_ref(A, hidden, p):
    """Pure-JAX fp32 reference replicating the PyTorch GNNCell semantics."""
    L = A.shape[1]
    e_in = hidden @ p["w_edge_in"].T + p["b_edge_in"][0]
    e_out = hidden @ p["w_edge_out"].T + p["b_edge_out"][0]
    input_in = jnp.matmul(A[:, :, :L], e_in) + p["b_iah"][0]
    input_out = jnp.matmul(A[:, :, L:2 * L], e_out) + p["b_ioh"][0]
    inputs = jnp.concatenate([input_in, input_out], axis=2)
    gi = inputs @ p["w_ih"].T + p["b_ih"][0]
    gh = hidden @ p["w_hh"].T + p["b_hh"][0]
    i_r, i_i, i_n = jnp.split(gi, 3, axis=2)
    h_r, h_i, h_n = jnp.split(gh, 3, axis=2)
    reset = jax.nn.sigmoid(i_r + h_r)
    inp = jax.nn.sigmoid(i_i + h_i)
    new = jnp.tanh(i_n + reset * h_n)
    return (1.0 - inp) * hidden + inp * new


def gnn_forward_ref(A, hidden, params, step=1):
    for _ in range(step):
        hidden = gnn_cell_ref(A, hidden, params)
    return hidden


if __name__ == "__main__":
    key = jax.random.PRNGKey(0)
    k_a, k_h, k_p, k_a2, k_h2 = jax.random.split(key, 5)

    # ---- small shapes consistent with the module ---------------------------
    B, L, E = 2, 8, 32          # batch, max_session_len, embedding_size
    A = jax.random.uniform(k_a, (B, L, 2 * L), jnp.float32)
    hidden = jax.random.normal(k_h, (B, L, E), jnp.float32)
    params = init_params(k_p, E)

    out = jax.block_until_ready(gnn_forward(A, hidden, params, step=1))
    ref = gnn_forward_ref(A, hidden, params, step=1)
    assert out.shape == (B, L, E)
    assert bool(jnp.all(jnp.isfinite(out)))
    assert float(jnp.max(jnp.abs(out - ref))) < 8e-2      # bf16 MXU operands

    # ---- batch-blocking tail + in-kernel multi-step (unrolled path) --------
    B2, step2 = 20, 2
    A2 = jax.random.uniform(k_a2, (B2, L, 2 * L), jnp.float32)
    hidden2 = jax.random.normal(k_h2, (B2, L, E), jnp.float32)
    out2 = jax.block_until_ready(gnn_forward(A2, hidden2, params, step=step2))
    ref2 = gnn_forward_ref(A2, hidden2, params, step=step2)
    assert out2.shape == (B2, L, E)
    assert float(jnp.max(jnp.abs(out2 - ref2))) < 8e-2

    # ---- long propagation exercises the lax.fori_loop path -----------------
    out3 = jax.block_until_ready(gnn_forward(A2, hidden2, params, step=6))
    ref3 = gnn_forward_ref(A2, hidden2, params, step=6)
    assert out3.shape == (B2, L, E)
    assert float(jnp.max(jnp.abs(out3 - ref3))) < 2e-1     # bf16 drift over 6 steps

    print("KERNEL_OK")
</pallas_src>

<mosaic_0001>
module attributes {stable_mosaic.version = 11 : i64} {
  func.func @kernel(%arg0: i32, %arg1: memref<8x8xbf16, #tpu.memory_space<vmem>>, %arg2: memref<8x8xbf16, #tpu.memory_space<vmem>>, %arg3: memref<8x96xf32, #tpu.memory_space<vmem>>, %arg4: memref<8x32xf32, #tpu.memory_space<vmem>>, %arg5: memref<32x288xbf16, #tpu.memory_space<vmem>>, %arg6: memref<1x96xf32, #tpu.memory_space<vmem>>, %arg7: memref<8x32xf32, #tpu.memory_space<vmem>>) attributes {dimension_semantics = [#tpu.dimension_semantics<parallel>], iteration_bounds = array<i64: 2>, scalar_prefetch = 0 : i64, scratch_operands = 0 : i64, tpu.core_type = #tpu.core_type<tc>, window_params = [{transform_indices = @transform_0, window_bounds = array<i64: 8, 8>}, {transform_indices = @transform_1, window_bounds = array<i64: 8, 8>}, {transform_indices = @transform_2, window_bounds = array<i64: 8, 96>}, {transform_indices = @transform_3, window_bounds = array<i64: 8, 32>}, {pipeline_mode = #tpu.pipeline_mode<synchronous>, transform_indices = @transform_4, window_bounds = array<i64: 32, 288>}, {pipeline_mode = #tpu.pipeline_mode<synchronous>, transform_indices = @transform_5, window_bounds = array<i64: 1, 96>}, {transform_indices = @transform_6, window_bounds = array<i64: 8, 32>}]} {
    %c0 = arith.constant 0 : index
    %c0_0 = arith.constant 0 : index
    %0 = vector.load %arg5[%c0, %c0_0] : memref<32x288xbf16, #tpu.memory_space<vmem>>, vector<32x288xbf16>
    %c0_1 = arith.constant 0 : index
    %c0_2 = arith.constant 0 : index
    %1 = vector.load %arg1[%c0_1, %c0_2] : memref<8x8xbf16, #tpu.memory_space<vmem>>, vector<8x8xbf16>
    %c0_3 = arith.constant 0 : index
    %c0_4 = arith.constant 0 : index
    %2 = vector.load %arg2[%c0_3, %c0_4] : memref<8x8xbf16, #tpu.memory_space<vmem>>, vector<8x8xbf16>
    %c0_5 = arith.constant 0 : index
    %c0_6 = arith.constant 0 : index
    %3 = vector.load %arg3[%c0_5, %c0_6] : memref<8x96xf32, #tpu.memory_space<vmem>>, vector<8x96xf32>
    %c0_7 = arith.constant 0 : index
    %c0_8 = arith.constant 0 : index
    %4 = vector.load %arg6[%c0_7, %c0_8] : memref<1x96xf32, #tpu.memory_space<vmem>>, vector<1x96xf32>
    %5 = vector.shape_cast %4 : vector<1x96xf32> to vector<1x96xf32>
    %6 = vector.broadcast %5 : vector<1x96xf32> to vector<8x96xf32>
    %c0_9 = arith.constant 0 : index
    %c0_10 = arith.constant 0 : index
    %7 = vector.load %arg4[%c0_9, %c0_10] : memref<8x32xf32, #tpu.memory_space<vmem>>, vector<8x32xf32>
    %8 = arith.truncf %7 : vector<8x32xf32> to vector<8x32xbf16>
    %cst = arith.constant dense<0.000000e+00> : vector<8x288xf32>
    %9 = tpu.matmul %8, %0, %cst {dimension_numbers = #tpu.dot_dimension_numbers<[1], [0], [0], [1], [0, 0, 1, 1], [], []>} : vector<8x32xbf16>, vector<32x288xbf16>, vector<8x288xf32> -> vector<8x288xf32>
    %10 = vector.extract_strided_slice %9 {offsets = [0, 0], sizes = [8, 96], strides = [1, 1]} : vector<8x288xf32> to vector<8x96xf32>
    %11 = arith.truncf %10 : vector<8x96xf32> to vector<8x96xbf16>
    %12 = vector.extract_strided_slice %9 {offsets = [0, 96], sizes = [8, 96], strides = [1, 1]} : vector<8x288xf32> to vector<8x96xf32>
    %13 = arith.truncf %12 : vector<8x96xf32> to vector<8x96xbf16>
    %14 = vector.extract_strided_slice %9 {offsets = [0, 192], sizes = [8, 96], strides = [1, 1]} : vector<8x288xf32> to vector<8x96xf32>
    %15 = arith.addf %14, %6 : vector<8x96xf32>
    %cst_11 = arith.constant dense<0.000000e+00> : vector<8x96xf32>
    %16 = tpu.matmul %1, %11, %cst_11 {dimension_numbers = #tpu.dot_dimension_numbers<[1], [0], [0], [1], [0, 0, 1, 1], [], []>} : vector<8x8xbf16>, vector<8x96xbf16>, vector<8x96xf32> -> vector<8x96xf32>
    %cst_12 = arith.constant dense<0.000000e+00> : vector<8x96xf32>
    %17 = tpu.matmul %2, %13, %cst_12 {dimension_numbers = #tpu.dot_dimension_numbers<[1], [0], [0], [1], [0, 0, 1, 1], [], []>} : vector<8x8xbf16>, vector<8x96xbf16>, vector<8x96xf32> -> vector<8x96xf32>
    %18 = arith.addf %16, %17 : vector<8x96xf32>
    %19 = arith.addf %18, %3 : vector<8x96xf32>
    %20 = vector.extract_strided_slice %19 {offsets = [0, 0], sizes = [8, 64], strides = [1, 1]} : vector<8x96xf32> to vector<8x64xf32>
    %21 = vector.extract_strided_slice %15 {offsets = [0, 0], sizes = [8, 64], strides = [1, 1]} : vector<8x96xf32> to vector<8x64xf32>
    %22 = arith.addf %20, %21 : vector<8x64xf32>
    %23 = arith.negf %22 : vector<8x64xf32>
    %24 = math.exp %23 : vector<8x64xf32>
    %cst_13 = arith.constant 1.000000e+00 : f32
    %25 = vector.broadcast %cst_13 : f32 to vector<8x64xf32>
    %26 = arith.addf %25, %24 : vector<8x64xf32>
    %27 = arith.divf %25, %26 : vector<8x64xf32>
    %28 = vector.extract_strided_slice %27 {offsets = [0, 0], sizes = [8, 32], strides = [1, 1]} : vector<8x64xf32> to vector<8x32xf32>
    %29 = vector.extract_strided_slice %27 {offsets = [0, 32], sizes = [8, 32], strides = [1, 1]} : vector<8x64xf32> to vector<8x32xf32>
    %30 = vector.extract_strided_slice %19 {offsets = [0, 64], sizes = [8, 32], strides = [1, 1]} : vector<8x96xf32> to vector<8x32xf32>
    %31 = vector.extract_strided_slice %15 {offsets = [0, 64], sizes = [8, 32], strides = [1, 1]} : vector<8x96xf32> to vector<8x32xf32>
    %32 = arith.mulf %28, %31 : vector<8x32xf32>
    %33 = arith.addf %30, %32 : vector<8x32xf32>
    %34 = math.tanh %33 : vector<8x32xf32>
    %cst_14 = arith.constant 1.000000e+00 : f32
    %35 = vector.broadcast %cst_14 : f32 to vector<8x32xf32>
    %36 = arith.subf %35, %29 : vector<8x32xf32>
    %37 = arith.mulf %36, %7 : vector<8x32xf32>
    %38 = arith.mulf %29, %34 : vector<8x32xf32>
    %39 = arith.addf %37, %38 : vector<8x32xf32>
    %c0_15 = arith.constant 0 : index
    %c0_16 = arith.constant 0 : index
    %40 = vector.load %arg7[%c0_15, %c0_16] : memref<8x32xf32, #tpu.memory_space<vmem>>, vector<8x32xf32>
    tpu.vector_store %arg7[%c0_15, %c0_16], %39 {strides = array<i32>} : memref<8x32xf32, #tpu.memory_space<vmem>>, vector<8x32xf32>,
    return
  }
  func.func @transform_0(%arg0: i32) -> (i32, i32) {
    %c0_i32 = arith.constant 0 : i32
    %c0_i32_0 = arith.constant 0 : i32
    return %arg0, %c0_i32 : i32, i32
  }
  func.func @transform_1(%arg0: i32) -> (i32, i32) {
    %c0_i32 = arith.constant 0 : i32
    %c0_i32_0 = arith.constant 0 : i32
    return %arg0, %c0_i32 : i32, i32
  }
  func.func @transform_2(%arg0: i32) -> (i32, i32) {
    %c0_i32 = arith.constant 0 : i32
    %c0_i32_0 = arith.constant 0 : i32
    return %arg0, %c0_i32 : i32, i32
  }
  func.func @transform_3(%arg0: i32) -> (i32, i32) {
    %c0_i32 = arith.constant 0 : i32
    %c0_i32_0 = arith.constant 0 : i32
    return %arg0, %c0_i32 : i32, i32
  }
  func.func @transform_4(%arg0: i32) -> (i32, i32) {
    %c0_i32 = arith.constant 0 : i32
    %c0_i32_0 = arith.constant 0 : i32
    %c0_i32_1 = arith.constant 0 : i32
    return %c0_i32, %c0_i32_0 : i32, i32
  }
  func.func @transform_5(%arg0: i32) -> (i32, i32) {
    %c0_i32 = arith.constant 0 : i32
    %c0_i32_0 = arith.constant 0 : i32
    %c0_i32_1 = arith.constant 0 : i32
    return %c0_i32, %c0_i32_0 : i32, i32
  }
  func.func @transform_6(%arg0: i32) -> (i32, i32) {
    %c0_i32 = arith.constant 0 : i32
    %c0_i32_0 = arith.constant 0 : i32
    return %arg0, %c0_i32 : i32, i32
  }
}

</mosaic_0001>

<llo_original>
// kernel: gnn_forward.1
$region0: #{gnn_forward.1}
  #allocation0 [shape = 'u32[]', space=smem, size = 0x4, offset = 0x4, fixed_abs, tag = 'smem constant byte address 0x4 - core index']
  #allocation1 [shape = 'u32[144,128]{1,0:T(1,128)}', space=vmem, size = 0x12000, scoped, tag = 'internal scratch']
  %s0 = inlined_call_operand.vmem [shape: bf16[16,8], index: 0, kind: input, shape index: {}]
  %s1 = inlined_call_operand.vmem [shape: bf16[16,8], index: 1, kind: input, shape index: {}]
  %s2 = inlined_call_operand.vmem [shape: f32[16,96], index: 2, kind: input, shape index: {}]
  %s3 = inlined_call_operand.vmem [shape: f32[16,32], index: 3, kind: input, shape index: {}]
  %s4 = inlined_call_operand.vmem [shape: bf16[32,288], index: 4, kind: input, shape index: {}]
  %s5 = inlined_call_operand.vmem [shape: f32[1,96], index: 5, kind: input, shape index: {}]
  %s6 = inlined_call_operand.hbm [shape: f32[16,32], index: 6, kind: output, shape index: {}]
  %s7 = sld [smem:[#allocation0]]
  $region57: #{gnn_forward.1} parent=0
    _
  %s9 = ssub.s32 1, %s7
  %s10 = scalar_select 0, %s9, %s7
  $region1: #{gnn_forward.1} parent=0
    #allocation2 [shape = 'u8[8192]{0}', space=vmem, size = 0x2000, scoped, tag = 'output window, operand 0']
    #allocation3 [shape = 's32[2]{0}', space=sflag, size = 0x8, scoped, tag = 'scoped memory for gnn_forward.1']
    %11 = vsyncpa [#allocation3], 0
    %s12 = scalar_lea.sflag [#allocation3], 1
    %13 = vsyncpa %s12, 0
    loop: start=0, step=1, limit=4
    $region2: #{gnn_forward.1} parent=1 // loop_pre_header
      _
    $region3: #{gnn_forward.1} parent=1 // loop_header
      %s15 = sphi 0, %s19
      %p16 = scmp.ge.s32.totalorder %s15, 4
      %s25 = sphi 0, %s27
      %s28 = sphi 0, %s25
      %s29 = sphi 0, %s28
      %s45 = sphi 0, %s29
      %s51 = sphi 0, %s53
      %s54 = sphi 0, %s51
      %s55 = sphi 0, %s54
      %s71 = sphi 0, %s55
      %s77 = sphi 0, %s79
      %s80 = sphi 0, %s77
      %s81 = sphi 0, %s80
      %s97 = sphi 0, %s81
      %s103 = sphi 0, %s105
      %s106 = sphi 0, %s103
      %s107 = sphi 0, %s106
      %s123 = sphi 0, %s107
      %s127 = sphi 0, %s127
      %s129 = sphi 0, %s127
      %s130 = sphi 0, %s129
      %s144 = sphi 0, %s130
      %s148 = sphi 0, %s148
      %s150 = sphi 0, %s148
      %s151 = sphi 0, %s150
      %s165 = sphi 0, %s151
      %s171 = sphi 0, %s173
      %s174 = sphi 0, %s171
      %s175 = sphi 0, %s174
      %s191 = sphi 0, %s175
    $region4: #{gnn_forward.1} parent=1 // loop_header_branch
      %18 = sbr.rel (%p16) target = $region8
    $region5: #{gnn_forward.1} parent=1 // loop_body
      %s20 = ssub.s32 %s15, 1
      %s21 = ssub.s32 %s15, 2
      %s22 = sadd.s32 %s15, 1
      %s23 = ssub.s32 %s15, %s22
      %p24 = scmp.eq.s32.totalorder %s23, 0
      %s26 = sadd.s32 %s25, 1
      %s27 = scalar_select %p24, %s25, %s26
      %p30 = pneg %p24
      %p31 = scmp.eq.s32.totalorder %s15, 1
      %p32 = por %p30, %p31
      %p33 = scmp.ne.s32.totalorder %s25, %s28
      %p34 = scmp.eq.s32.totalorder %s15, 0
      %p35 = por %p33, %p34
      %p36 = scmp.ne.s32.totalorder %s25, %s28
      %p37 = scmp.eq.s32.totalorder %s20, 1
      %p38 = por %p36, %p37
      %p39 = scmp.ne.s32.totalorder %s28, %s29
      %p40 = scmp.eq.s32.totalorder %s20, 0
      %p41 = por %p39, %p40
      %p42 = scmp.ne.s32.totalorder %s28, %s29
      %p43 = scmp.eq.s32.totalorder %s21, 1
      %p44 = por %p42, %p43
      %p46 = scmp.ne.s32.totalorder %s29, %s45
      %p47 = scmp.eq.s32.totalorder %s21, 0
      %p48 = por %p46, %p47
      %s49 = ssub.s32 %s15, %s22
      %p50 = scmp.eq.s32.totalorder %s49, 0
      %s52 = sadd.s32 %s51, 1
      %s53 = scalar_select %p50, %s51, %s52
      %p56 = pneg %p50
      %p57 = scmp.eq.s32.totalorder %s15, 1
      %p58 = por %p56, %p57
      %p59 = scmp.ne.s32.totalorder %s51, %s54
      %p60 = scmp.eq.s32.totalorder %s15, 0
      %p61 = por %p59, %p60
      %p62 = scmp.ne.s32.totalorder %s51, %s54
      %p63 = scmp.eq.s32.totalorder %s20, 1
      %p64 = por %p62, %p63
      %p65 = scmp.ne.s32.totalorder %s54, %s55
      %p66 = scmp.eq.s32.totalorder %s20, 0
      %p67 = por %p65, %p66
      %p68 = scmp.ne.s32.totalorder %s54, %s55
      %p69 = scmp.eq.s32.totalorder %s21, 1
      %p70 = por %p68, %p69
      %p72 = scmp.ne.s32.totalorder %s55, %s71
      %p73 = scmp.eq.s32.totalorder %s21, 0
      %p74 = por %p72, %p73
      %s75 = ssub.s32 %s15, %s22
      %p76 = scmp.eq.s32.totalorder %s75, 0
      %s78 = sadd.s32 %s77, 1
      %s79 = scalar_select %p76, %s77, %s78
      %p82 = pneg %p76
      %p83 = scmp.eq.s32.totalorder %s15, 1
      %p84 = por %p82, %p83
      %p85 = scmp.ne.s32.totalorder %s77, %s80
      %p86 = scmp.eq.s32.totalorder %s15, 0
      %p87 = por %p85, %p86
      %p88 = scmp.ne.s32.totalorder %s77, %s80
      %p89 = scmp.eq.s32.totalorder %s20, 1
      %p90 = por %p88, %p89
      %p91 = scmp.ne.s32.totalorder %s80, %s81
      %p92 = scmp.eq.s32.totalorder %s20, 0
      %p93 = por %p91, %p92
      %p94 = scmp.ne.s32.totalorder %s80, %s81
      %p95 = scmp.eq.s32.totalorder %s21, 1
      %p96 = por %p94, %p95
      %p98 = scmp.ne.s32.totalorder %s81, %s97
      %p99 = scmp.eq.s32.totalorder %s21, 0
      %p100 = por %p98, %p99
      %s101 = ssub.s32 %s15, %s22
      %p102 = scmp.eq.s32.totalorder %s101, 0
      %s104 = sadd.s32 %s103, 1
      %s105 = scalar_select %p102, %s103, %s104
      %p108 = pneg %p102
      %p109 = scmp.eq.s32.totalorder %s15, 1
      %p110 = por %p108, %p109
      %p111 = scmp.ne.s32.totalorder %s103, %s106
      %p112 = scmp.eq.s32.totalorder %s15, 0
      %p113 = por %p111, %p112
      %p114 = scmp.ne.s32.totalorder %s103, %s106
      %p115 = scmp.eq.s32.totalorder %s20, 1
      %p116 = por %p114, %p115
      %p117 = scmp.ne.s32.totalorder %s106, %s107
      %p118 = scmp.eq.s32.totalorder %s20, 0
      %p119 = por %p117, %p118
      %p120 = scmp.ne.s32.totalorder %s106, %s107
      %p121 = scmp.eq.s32.totalorder %s21, 1
      %p122 = por %p120, %p121
      %p124 = scmp.ne.s32.totalorder %s107, %s123
      %p125 = scmp.eq.s32.totalorder %s21, 0
      %p126 = por %p124, %p125
      %s128 = sadd.s32 %s127, 1
      %p131 = scmp.eq.s32.totalorder %s15, 1
      %p132 = scmp.ne.s32.totalorder %s127, %s129
      %p133 = scmp.eq.s32.totalorder %s15, 0
      %p134 = por %p132, %p133
      %p135 = scmp.ne.s32.totalorder %s127, %s129
      %p136 = scmp.eq.s32.totalorder %s20, 1
      %p137 = por %p135, %p136
      %p138 = scmp.ne.s32.totalorder %s129, %s130
      %p139 = scmp.eq.s32.totalorder %s20, 0
      %p140 = por %p138, %p139
      %p141 = scmp.ne.s32.totalorder %s129, %s130
      %p142 = scmp.eq.s32.totalorder %s21, 1
      %p143 = por %p141, %p142
      %p145 = scmp.ne.s32.totalorder %s130, %s144
      %p146 = scmp.eq.s32.totalorder %s21, 0
      %p147 = por %p145, %p146
      %s149 = sadd.s32 %s148, 1
      %p152 = scmp.eq.s32.totalorder %s15, 1
      %p153 = scmp.ne.s32.totalorder %s148, %s150
      %p154 = scmp.eq.s32.totalorder %s15, 0
      %p155 = por %p153, %p154
      %p156 = scmp.ne.s32.totalorder %s148, %s150
      %p157 = scmp.eq.s32.totalorder %s20, 1
      %p158 = por %p156, %p157
      %p159 = scmp.ne.s32.totalorder %s150, %s151
      %p160 = scmp.eq.s32.totalorder %s20, 0
      %p161 = por %p159, %p160
      %p162 = scmp.ne.s32.totalorder %s150, %s151
      %p163 = scmp.eq.s32.totalorder %s21, 1
      %p164 = por %p162, %p163
      %p166 = scmp.ne.s32.totalorder %s151, %s165
      %p167 = scmp.eq.s32.totalorder %s21, 0
      %p168 = por %p166, %p167
      %s169 = ssub.s32 %s15, %s22
      %p170 = scmp.eq.s32.totalorder %s169, 0
      %s172 = sadd.s32 %s171, 1
      %s173 = scalar_select %p170, %s171, %s172
      %p176 = pneg %p170
      %p177 = scmp.eq.s32.totalorder %s15, 1
      %p178 = por %p176, %p177
      %p179 = scmp.ne.s32.totalorder %s171, %s174
      %p180 = scmp.eq.s32.totalorder %s15, 0
      %p181 = por %p179, %p180
      %p182 = scmp.ne.s32.totalorder %s171, %s174
      %p183 = scmp.eq.s32.totalorder %s20, 1
      %p184 = por %p182, %p183
      %p185 = scmp.ne.s32.totalorder %s174, %s175
      %p186 = scmp.eq.s32.totalorder %s20, 0
      %p187 = por %p185, %p186
      %p188 = scmp.ne.s32.totalorder %s174, %s175
      %p189 = scmp.eq.s32.totalorder %s21, 1
      %p190 = por %p188, %p189
      %p192 = scmp.ne.s32.totalorder %s175, %s191
      %p193 = scmp.eq.s32.totalorder %s21, 0
      %p194 = por %p192, %p193
      %p195 = scmp.le.s32.totalorder 1, %s15
      %p196 = scmp.lt.s32.totalorder %s15, 3
      %p197 = pnand %p195, %p196
      %p198 = pneg %p197
      // Predicated region
      $region9: #{gnn_forward.1} parent=5 // pred_check
        _
      $region10: #{gnn_forward.1} parent=5 // pred_check_branch
        %200 = sbr.rel (%p197) target = $region12
      $region11: #{gnn_forward.1} parent=5 // pred_region
        %s201 = ssub.s32 %s15, 1
        // Predicated region
        $region13: #{gnn_forward.1} parent=11 // pred_check
          %p202 = pneg %p140
        $region14: #{gnn_forward.1} parent=11 // pred_check_branch
          %204 = sbr.rel (%p202) target = $region16
        $region15: #{gnn_forward.1} parent=11 // pred_region
          _
        $region16: #{gnn_forward.1} parent=11 // pred_fallthru
          _
        // Predicated region
        $region17: #{gnn_forward.1} parent=11 // pred_check
          %p205 = pneg %p161
        $region18: #{gnn_forward.1} parent=11 // pred_check_branch
          %207 = sbr.rel (%p205) target = $region20
        $region19: #{gnn_forward.1} parent=11 // pred_region
          _
        $region20: #{gnn_forward.1} parent=11 // pred_fallthru
          _
      $region12: #{gnn_forward.1} parent=5 // pred_fallthru
        _
      %p208 = scmp.lt.s32.totalorder %s15, 2
      // Predicated region
      $region21: #{gnn_forward.1} parent=5 // pred_check
        %p209 = pneg %p208
      $region22: #{gnn_forward.1} parent=5 // pred_check_branch
        %211 = sbr.rel (%p209) target = $region24
      $region23: #{gnn_forward.1} parent=5 // pred_region
        // Predicated region
        $region25: #{gnn_forward.1} parent=23 // pred_check
          %p212 = pneg %p35
        $region26: #{gnn_forward.1} parent=23 // pred_check_branch
          %214 = sbr.rel (%p212) target = $region28
        $region27: #{gnn_forward.1} parent=23 // pred_region
          %p215 = scmp.lt.s32.totalorder %s15, 1
          %s216 = scalar_select %p215, %s15, 1
          %s217 = smul.addr %s216, 4
          %s218 = scalar_lea.vmem %s0, %s217
        $region28: #{gnn_forward.1} parent=23 // pred_fallthru
          _
        // Predicated region
        $region29: #{gnn_forward.1} parent=23 // pred_check
          %p219 = pneg %p61
        $region30: #{gnn_forward.1} parent=23 // pred_check_branch
          %221 = sbr.rel (%p219) target = $region32
        $region31: #{gnn_forward.1} parent=23 // pred_region
          %p222 = scmp.lt.s32.totalorder %s15, 1
          %s223 = scalar_select %p222, %s15, 1
          %s224 = smul.addr %s223, 4
          %s225 = scalar_lea.vmem %s1, %s224
        $region32: #{gnn_forward.1} parent=23 // pred_fallthru
          _
        // Predicated region
        $region33: #{gnn_forward.1} parent=23 // pred_check
          %p226 = pneg %p87
        $region34: #{gnn_forward.1} parent=23 // pred_check_branch
          %228 = sbr.rel (%p226) target = $region36
        $region35: #{gnn_forward.1} parent=23 // pred_region
          %p229 = scmp.lt.s32.totalorder %s15, 1
          %s230 = scalar_select %p229, %s15, 1
          %s231 = smul.addr %s230, 8
          %s232 = scalar_lea.vmem %s2, %s231
        $region36: #{gnn_forward.1} parent=23 // pred_fallthru
          _
        // Predicated region
        $region37: #{gnn_forward.1} parent=23 // pred_check
          %p233 = pneg %p113
        $region38: #{gnn_forward.1} parent=23 // pred_check_branch
          %235 = sbr.rel (%p233) target = $region40
        $region39: #{gnn_forward.1} parent=23 // pred_region
          %p236 = scmp.lt.s32.totalorder %s15, 1
          %s237 = scalar_select %p236, %s15, 1
          %s238 = smul.addr %s237, 8
          %s239 = scalar_lea.vmem %s3, %s238
        $region40: #{gnn_forward.1} parent=23 // pred_fallthru
          _
      $region24: #{gnn_forward.1} parent=5 // pred_fallthru
        _
      %p240 = scmp.le.s32.totalorder 1, %s15
      %p241 = scmp.lt.s32.totalorder %s15, 3
      %p242 = pnand %p240, %p241
      %p243 = pneg %p242
      // Predicated region
      $region41: #{gnn_forward.1} parent=5 // pred_check
        _
      $region42: #{gnn_forward.1} parent=5 // pred_check_branch
        %245 = sbr.rel (%p242) target = $region44
      $region43: #{gnn_forward.1} parent=5 // pred_region
        %s246 = ssub.s32 %s15, 1
        %p247 = scmp.lt.s32.totalorder %s20, 1
        %s248 = scalar_select %p247, %s20, 1
        %s249 = smul.addr %s248, 4
        %s250 = scalar_lea.vmem %s0, %s249
        %p251 = pneg %p41
        %p252 = pneg %p38
        %p253 = scmp.lt.s32.totalorder %s20, 1
        %s254 = scalar_select %p253, %s20, 1
        %s255 = smul.addr %s254, 4
        %s256 = scalar_lea.vmem %s1, %s255
        %p257 = pneg %p67
        %p258 = pneg %p64
        %p259 = scmp.lt.s32.totalorder %s20, 1
        %s260 = scalar_select %p259, %s20, 1
        %s261 = smul.addr %s260, 8
        %s262 = scalar_lea.vmem %s2, %s261
        %p263 = pneg %p93
        %p264 = pneg %p90
        %p265 = scmp.lt.s32.totalorder %s20, 1
        %s266 = scalar_select %p265, %s20, 1
        %s267 = smul.addr %s266, 8
        %s268 = scalar_lea.vmem %s3, %s267
        %p269 = pneg %p119
        %p270 = pneg %p116
        %p271 = pneg %p140
        %p272 = pneg %p137
        %p273 = pneg %p161
        %p274 = pneg %p158
        %p275 = pneg %p187
        %p276 = pneg %p184
        %s277 = sand.u32 %s174, 1
        %s278 = scalar_lea.sflag [#allocation3], %s277
        %s279 = sand.u32 %s174, 1
        %s280 = smul.addr %s279, 8
        %s281 = scalar_lea.vmem [#allocation2], %s280
        %p282 = scmp.lt.s32.totalorder %s20, 1
        %s283 = scalar_select %p282, %s20, 1
        %s284 = smul.addr %s283, 4
        %s285 = scalar_lea.vmem %s0, %s284
        %p286 = scmp.lt.s32.totalorder %s20, 1
        %s287 = scalar_select %p286, %s20, 1
        %s288 = smul.addr %s287, 4
        %s289 = scalar_lea.vmem %s1, %s288
        %p290 = scmp.lt.s32.totalorder %s20, 1
        %s291 = scalar_select %p290, %s20, 1
        %s292 = smul.addr %s291, 8
        %s293 = scalar_lea.vmem %s2, %s292
        %p294 = scmp.lt.s32.totalorder %s20, 1
        %s295 = scalar_select %p294, %s20, 1
        %s296 = smul.addr %s295, 8
        %s297 = scalar_lea.vmem %s3, %s296
        %v299 = vld [vmem:[%s4] sm:$0xff]
        %v300 = vld [vmem:[%s4 + $0x8] sm:$0xf]
        %v301 = vld [vmem:[%s4 + $0xc] sm:$0xff]
        %v302 = vld [vmem:[%s4 + $0x14] sm:$0xf]
        %v303 = vld [vmem:[%s4 + $0x18] sm:$0xff]
        %v304 = vld [vmem:[%s4 + $0x20] sm:$0xf]
        %v305 = vld [vmem:[%s4 + $0x24] sm:$0xff]
        %v306 = vld [vmem:[%s4 + $0x2c] sm:$0xf]
        %v307 = vld [vmem:[%s285] sm:$0xf]
        %v308 = vld [vmem:[%s289] sm:$0xf]
        %v309 = vld [vmem:[%s293] sm:$0xff]
        %v310 = vld [vmem:[%s5] sm:$0x1]
        %v312 = vlaneseq
        %v313 = vshrl.u32 %v312, 7
        %v314 = vsub.s32 0, %v313
        %v315 = vrot.slane %v310, %v314
        %v316 = vld [vmem:[%s297] sm:$0xff]
        %v317 = vpack.c.bf16 %v316, %v316
        %v326 = vunpack.c.l.b16 %v299
        %v327 = vunpack.c.h.b16 %v299
        %v328 = vunpack.c.l.b16 %v300
        %v329 = vunpack.c.l.b16 %v301
        %v330 = vunpack.c.h.b16 %v301
        %v331 = vunpack.c.l.b16 %v302
        %v332 = vunpack.c.l.b16 %v303
        %v333 = vunpack.c.h.b16 %v303
        %v334 = vunpack.c.l.b16 %v304
        %v335 = vunpack.c.l.b16 %v305
        %v336 = vunpack.c.h.b16 %v305
        %v337 = vunpack.c.l.b16 %v306
        %v338 = vpack.c.b16 %v329, %v326
        %v339 = vpack.c.b16 %v330, %v327
        %v340 = vpack.c.b16 %v331, %v328
        %v341 = vpack.c.b16 %v335, %v332
        %v342 = vpack.c.b16 %v336, %v333
        %v343 = vpack.c.b16 %v337, %v334
        %vm350 = vcmask 261120
        %v352 = vsel %vm350, %v317, 0
        %354 = vmatprep.subr.bf16.mxu0 0
        %355 = vmatpush1.bf16.msra.mxu0 0
        %356 = vmatprep.subr.bf16.mxu0 0
        %357 = vmatpush1.bf16.msra.mxu0 0
        %358 = vmatprep.subr.bf16.mxu0 0
        %359 = vmatpush1.bf16.msra.mxu0 0
        %360 = vmatprep.subr.bf16.mxu0 0
        %361 = vmatpush1.bf16.msra.mxu0 0
        %362 = vmatprep.subr.bf16.mxu0 0
        %363 = vmatpush1.bf16.msra.mxu0 0
        %364 = vmatprep.subr.bf16.mxu0 0
        %365 = vmatpush1.bf16.msra.mxu0 0
        %366 = vmatprep.subr.bf16.mxu0 %v342
        %367 = vmatpush1.bf16.msra.mxu0 %v341
        %368 = vmatprep.subr.bf16.mxu0 %v339
        %369 = vmatpush1.bf16.msra.mxu0 %v338
        %370 = vmatprep.subr.bf16.mxu0 0
        %371 = vmatpush2.bf16.msra.mxu0 0
        %372 = vmatprep.subr.bf16.mxu0 0
        %373 = vmatpush2.bf16.msra.mxu0 0
        %374 = vmatprep.subr.bf16.mxu0 0
        %375 = vmatpush2.bf16.msra.mxu0 0
        %376 = vmatprep.subr.bf16.mxu0 0
        %377 = vmatpush2.bf16.msra.mxu0 0
        %378 = vmatprep.subr.bf16.mxu0 0
        %379 = vmatpush2.bf16.msra.mxu0 0
        %380 = vmatprep.subr.bf16.mxu0 0
        %381 = vmatpush2.bf16.msra.mxu0 0
        %382 = vmatprep.subr.bf16.mxu0 0
        %383 = vmatpush2.bf16.msra.mxu0 0
        %384 = vmatprep.subr.bf16.mxu0 0
        %385 = vmatpush2.bf16.msra.mxu0 0
        %386 = vmatprep.mubr.bf16.mxu0 0
        %387 = vmatmul.mubr.bf16.gmra.mxu0 %v352
        %v388 = vpop.f32.mrf.mxu0
        %v389 = vadd.f32 0.0, %v388
        %v390 = vpop.f32.mrf.mxu0
        %v391 = vadd.f32 0.0, %v390
        %v392 = vpop.f32.mrf.mxu0
        %v393 = vpop.f32.mrf.mxu0
        %394 = vdwg.mxu0
        %395 = vmatprep.subr.bf16.mxu0 0
        %396 = vmatpush1.bf16.msra.mxu0 0
        %397 = vmatprep.subr.bf16.mxu0 0
        %398 = vmatpush1.bf16.msra.mxu0 0
        %399 = vmatprep.subr.bf16.mxu0 0
        %400 = vmatpush1.bf16.msra.mxu0 0
        %401 = vmatprep.subr.bf16.mxu0 0
        %402 = vmatpush1.bf16.msra.mxu0 0
        %403 = vmatprep.subr.bf16.mxu0 0
        %404 = vmatpush1.bf16.msra.mxu0 0
        %405 = vmatprep.subr.bf16.mxu0 0
        %406 = vmatpush1.bf16.msra.mxu0 0
        %407 = vmatprep.subr.bf16.mxu0 0
        %408 = vmatpush1.bf16.msra.mxu0 %v343
        %409 = vmatprep.subr.bf16.mxu0 0
        %410 = vmatpush1.bf16.msra.mxu0 %v340
        %411 = vmatprep.subr.bf16.mxu0 0
        %412 = vmatpush2.bf16.msra.mxu0 0
        %413 = vmatprep.subr.bf16.mxu0 0
        %414 = vmatpush2.bf16.msra.mxu0 0
        %415 = vmatprep.subr.bf16.mxu0 0
        %416 = vmatpush2.bf16.msra.mxu0 0
        %417 = vmatprep.subr.bf16.mxu0 0
        %418 = vmatpush2.bf16.msra.mxu0 0
        %419 = vmatprep.subr.bf16.mxu0 0
        %420 = vmatpush2.bf16.msra.mxu0 0
        %421 = vmatprep.subr.bf16.mxu0 0
        %422 = vmatpush2.bf16.msra.mxu0 0
        %423 = vmatprep.subr.bf16.mxu0 0
        %424 = vmatpush2.bf16.msra.mxu0 0
        %425 = vmatprep.subr.bf16.mxu0 0
        %426 = vmatpush2.bf16.msra.mxu0 0
        %427 = vmatprep.mubr.bf16.mxu0 0
        %428 = vmatmul.mubr.bf16.gmra.mxu0 %v352
        %v429 = vpop.f32.mrf.mxu0
        %v430 = vadd.f32 0.0, %v429
        %v431 = vpop.f32.mrf.mxu0
        %v432 = vpop.f32.mrf.mxu0
        %v433 = vpop.f32.mrf.mxu0
        %434 = vdwg.mxu0
        %v435 = vpack.c.bf16 %v389, %v389
        %v436 = vpack.c.bf16 %v391, %v391
        %437 = vrot.lane.b32.xlu0 %v315, 64
        %v438 = vpop.permute.xlu0 %437
        %v440 = vadd.f32 %v391, %v438
        %v441 = vadd.f32 %v430, %v438
        %444 = vrot.lane.b32.xlu0 %v435, 32
        %v445 = vpop.permute.xlu0 %444
        %446 = vrot.lane.b32.xlu0 %v436, 32
        %v447 = vpop.permute.xlu0 %446
        %vm448 = vcmask 261120
        %v449 = vsel %vm448, %v445, %v447
        %vm450 = vcmask 64512
        %v452 = vsel %vm450, %v308, 0
        %vm454 = vcmask 1043456
        %v456 = vsel %vm454, %v449, 0
        %458 = vmatprep.subr.bf16.mxu0 0
        %459 = vmatpush1.bf16.msra.mxu0 0
        %460 = vmatprep.subr.bf16.mxu0 0
        %461 = vmatpush1.bf16.msra.mxu0 0
        %462 = vmatprep.subr.bf16.mxu0 0
        %463 = vmatpush1.bf16.msra.mxu0 0
        %464 = vmatprep.subr.bf16.mxu0 0
        %465 = vmatpush1.bf16.msra.mxu0 0
        %466 = vmatprep.subr.bf16.mxu0 0
        %467 = vmatpush1.bf16.msra.mxu0 0
        %468 = vmatprep.subr.bf16.mxu0 0
        %469 = vmatpush1.bf16.msra.mxu0 0
        %470 = vmatprep.subr.bf16.mxu0 0
        %471 = vmatpush1.bf16.msra.mxu0 0
        %472 = vmatprep.subr.bf16.mxu0 0
        %473 = vmatpush1.bf16.msra.mxu0 %v456
        %474 = vmatprep.subr.bf16.mxu0 0
        %475 = vmatpush2.bf16.msra.mxu0 0
        %476 = vmatprep.subr.bf16.mxu0 0
        %477 = vmatpush2.bf16.msra.mxu0 0
        %478 = vmatprep.subr.bf16.mxu0 0
        %479 = vmatpush2.bf16.msra.mxu0 0
        %480 = vmatprep.subr.bf16.mxu0 0
        %481 = vmatpush2.bf16.msra.mxu0 0
        %482 = vmatprep.subr.bf16.mxu0 0
        %483 = vmatpush2.bf16.msra.mxu0 0
        %484 = vmatprep.subr.bf16.mxu0 0
        %485 = vmatpush2.bf16.msra.mxu0 0
        %486 = vmatprep.subr.bf16.mxu0 0
        %487 = vmatpush2.bf16.msra.mxu0 0
        %488 = vmatprep.subr.bf16.mxu0 0
        %489 = vmatpush2.bf16.msra.mxu0 0
        %490 = vmatprep.mubr.bf16.mxu0 0
        %491 = vmatmul.mubr.bf16.gmra.mxu0 %v452
        %v492 = vpop.f32.mrf.mxu0
        %v493 = vadd.f32 0.0, %v492
        %v494 = vpop.f32.mrf.mxu0
        %v495 = vpop.f32.mrf.mxu0
        %v496 = vpop.f32.mrf.mxu0
        %497 = vdwg.mxu0
        %v499 = vsel %vm450, %v307, 0
        %v502 = vsel %vm454, %v435, 0
        %504 = vmatprep.subr.bf16.mxu0 0
        %505 = vmatpush1.bf16.msra.mxu0 0
        %506 = vmatprep.subr.bf16.mxu0 0
        %507 = vmatpush1.bf16.msra.mxu0 0
        %508 = vmatprep.subr.bf16.mxu0 0
        %509 = vmatpush1.bf16.msra.mxu0 0
        %510 = vmatprep.subr.bf16.mxu0 0
        %511 = vmatpush1.bf16.msra.mxu0 0
        %512 = vmatprep.subr.bf16.mxu0 0
        %513 = vmatpush1.bf16.msra.mxu0 0
        %514 = vmatprep.subr.bf16.mxu0 0
        %515 = vmatpush1.bf16.msra.mxu0 0
        %516 = vmatprep.subr.bf16.mxu0 0
        %517 = vmatpush1.bf16.msra.mxu0 0
        %518 = vmatprep.subr.bf16.mxu0 0
        %519 = vmatpush1.bf16.msra.mxu0 %v502
        %520 = vmatprep.subr.bf16.mxu0 0
        %521 = vmatpush2.bf16.msra.mxu0 0
        %522 = vmatprep.subr.bf16.mxu0 0
        %523 = vmatpush2.bf16.msra.mxu0 0
        %524 = vmatprep.subr.bf16.mxu0 0
        %525 = vmatpush2.bf16.msra.mxu0 0
        %526 = vmatprep.subr.bf16.mxu0 0
        %527 = vmatpush2.bf16.msra.mxu0 0
        %528 = vmatprep.subr.bf16.mxu0 0
        %529 = vmatpush2.bf16.msra.mxu0 0
        %530 = vmatprep.subr.bf16.mxu0 0
        %531 = vmatpush2.bf16.msra.mxu0 0
        %532 = vmatprep.subr.bf16.mxu0 0
        %533 = vmatpush2.bf16.msra.mxu0 0
        %534 = vmatprep.subr.bf16.mxu0 0
        %535 = vmatpush2.bf16.msra.mxu0 0
        %536 = vmatprep.mubr.bf16.mxu0 0
        %537 = vmatmul.mubr.bf16.gmra.mxu0 %v499
        %v538 = vpop.f32.mrf.mxu0
        %v539 = vadd.f32 %v493, %v538
        %v540 = vpop.f32.mrf.mxu0
        %v541 = vpop.f32.mrf.mxu0
        %v542 = vpop.f32.mrf.mxu0
        %543 = vdwg.mxu0
        %v544 = vadd.f32 %v539, %v309
        %546 = vrot.lane.b32.xlu0 %v440, 64
        %v547 = vpop.permute.xlu0 %546
        %v549 = vadd.f32 %v544, %v547
        %v550 = vxor.u32 %v549, 2147483648
        %v551 = vmul.f32 %v550, 1.442695
        %v552 = vpow.pop %v551
        %v553 = vadd.f32 %v552, 1.0
        %v554 = vrcp.pop %v553
        %v555 = vmul.f32 1.0, %v554
        %v556 = vmul.f32 %v555, %v441
        %558 = vrot.lane.b32.xlu0 %v556, 64
        %v559 = vpop.permute.xlu0 %558
        %v561 = vadd.f32 %v544, %v559
        %v562 = vtanh.pop %v561
        %v563 = vsub.f32 1.0, %v555
        %565 = vrot.lane.b32.xlu0 %v316, 32
        %v566 = vpop.permute.xlu0 %565
        %v568 = vmul.f32 %v563, %v566
        %570 = vrot.lane.b32.xlu0 %v562, 96
        %v571 = vpop.permute.xlu0 %570
        %v573 = vmul.f32 %v555, %v571
        %v574 = vadd.f32 %v568, %v573
        %576 = vrot.lane.b32.xlu0 %v574, 96
        %v577 = vpop.permute.xlu0 %576
        %579 = vst.msk [vmem:[%s281] sm:$0xff] %vm350, %v577
        %s580 = sand.u32 %s174, 1
        %s581 = scalar_lea.sflag [#allocation3], %s580
        %s582 = sand.u32 %s174, 1
        %s583 = smul.addr %s582, 8
        %s584 = scalar_lea.vmem [#allocation2], %s583
        // Predicated region
        $region45: #{gnn_forward.1} parent=43 // pred_check
          %p585 = pneg %p184
        $region46: #{gnn_forward.1} parent=43 // pred_check_branch
          %587 = sbr.rel (%p585) target = $region48
        $region47: #{gnn_forward.1} parent=43 // pred_region
          %s589 = ssub.s32 128, 128
          %590 = vsyncadd %s581, %s589
          %s591 = smul.addr %s20, 128
          %s592 = scalar_lea.hbm %s6, %s591
          %s594 = sshll.u32 %s584, 4
          %s595 = int_to_ptr.vmem [resolvable:$true] %s594
          %597 = dma.vmem_to_hbm [thread:$0]  %s595, 128, %s592, %s581
        $region48: #{gnn_forward.1} parent=43 // pred_fallthru
          _
      $region44: #{gnn_forward.1} parent=5 // pred_fallthru
        _
      %p598 = scmp.le.s32.totalorder 2, %s15
      // Predicated region
      $region49: #{gnn_forward.1} parent=5 // pred_check
        %p599 = pneg %p598
      $region50: #{gnn_forward.1} parent=5 // pred_check_branch
        %601 = sbr.rel (%p599) target = $region52
      $region51: #{gnn_forward.1} parent=5 // pred_region
        %s602 = ssub.s32 %s15, 2
        // Predicated region
        $region53: #{gnn_forward.1} parent=51 // pred_check
          %p603 = pneg %p190
        $region54: #{gnn_forward.1} parent=51 // pred_check_branch
          %605 = sbr.rel (%p603) target = $region56
        $region55: #{gnn_forward.1} parent=51 // pred_region
          %s606 = sand.u32 %s175, 1
          %s607 = scalar_lea.sflag [#allocation3], %s606
          %s608 = sand.u32 %s175, 1
          %s609 = smul.addr %s608, 8
          %s610 = scalar_lea.vmem [#allocation2], %s609
          %611 = dma.done %s607, 128
        $region56: #{gnn_forward.1} parent=51 // pred_fallthru
          _
      $region52: #{gnn_forward.1} parent=5 // pred_fallthru
        _
    $region6: #{gnn_forward.1} parent=1 // loop_footer
      %s19 = sadd.s32 1, %s15
    $region7: #{gnn_forward.1} parent=1 // loop_footer_branch
      %14 = sbr.rel target = $region3
    $region8: #{gnn_forward.1} parent=1 // loop_exit
      _
    %612 = vsyncpa [#allocation3], 1
    %s613 = scalar_lea.sflag [#allocation3], 1
    %614 = vsyncpa %s613, 1

</llo_original>
